<compile_context>
chip_gen: v7x
topology: tpu7x:2x2x1
jax: 0.10.0
libtpu: 0.0.40
codegen_flags: <defaults>
</compile_context>

<pallas_src>
import functools

import jax
import jax.numpy as jnp
from jax import lax
from jax.experimental import pallas as pl
from jax.experimental.pallas import tpu as pltpu


_EPS = 1e-12            # F.normalize default eps
_EPS_SQ = _EPS * _EPS   # rsqrt(max(sumsq, eps^2)) == 1 / max(||v||, eps)


def _round_up(a, b):
    return ((a + b - 1) // b) * b


def _cosine_kernel(x_ref, w_ref, o_ref, *, use_bf16_matmul):
    """One (tm, tn) output tile: o = inv_x * (x @ w) * inv_w, norms in f32."""
    x = x_ref[...]
    w = w_ref[...]

    # Row / column inverse norms in f32 (exact: full feature dim per block).
    xf = x.astype(jnp.float32)
    wf = w.astype(jnp.float32)
    inv_x = lax.rsqrt(
        jnp.maximum(jnp.sum(xf * xf, axis=1, keepdims=True), jnp.float32(_EPS_SQ))
    )  # (tm, 1)
    inv_w = lax.rsqrt(
        jnp.maximum(jnp.sum(wf * wf, axis=0, keepdims=True), jnp.float32(_EPS_SQ))
    )  # (1, tn)

    if use_bf16_matmul:
        a = x.astype(jnp.bfloat16)
        b = w.astype(jnp.bfloat16)
    else:
        a = xf
        b = wf

    prod = jnp.dot(a, b, preferred_element_type=jnp.float32)
    o_ref[...] = (prod * inv_x * inv_w).astype(o_ref.dtype)


def prepare_weight(weight, *, tn=256, use_bf16_matmul=True):
    """Pad classes to a tile multiple and (optionally) cast to bf16.

    Call ONCE at init / parameter-load time, NOT per forward: for C=1000,
    D=2048 the pad alone would otherwise re-read + re-write the full 8 MiB
    weight in HBM on every call.
    """
    D, C = weight.shape
    tn_eff = min(tn, _round_up(C, 128))
    Cp = _round_up(C, tn_eff)
    w_p = weight if Cp == C else jnp.pad(weight, ((0, 0), (0, Cp - C)))
    if use_bf16_matmul:
        w_p = w_p.astype(jnp.bfloat16)
    return w_p, tn_eff


def cosine_classifier_forward(x, w_prepared, num_classes, tn_eff, *, tm=256,
                              use_bf16_matmul=True):
    """x: (B, D) f32, w_prepared: (D, Cp) from prepare_weight -> (B, num_classes) f32."""
    B, D = x.shape
    Dw, Cp = w_prepared.shape
    assert D == Dw, "feat_dim mismatch"
    assert Cp % tn_eff == 0

    # Batch tile: multiple of 8 sublanes, no larger than needed.
    tm_eff = min(tm, _round_up(B, 8))
    Bp = _round_up(B, tm_eff)
    x_p = x if Bp == B else jnp.pad(x, ((0, Bp - B), (0, 0)))

    kernel = functools.partial(_cosine_kernel, use_bf16_matmul=use_bf16_matmul)

    out = pl.pallas_call(
        kernel,
        out_shape=jax.ShapeDtypeStruct((Bp, Cp), jnp.float32),
        grid_spec=pltpu.PrefetchScalarGridSpec(
            num_scalar_prefetch=0,
            grid=(Bp // tm_eff, Cp // tn_eff),
            in_specs=[
                # x: one batch tile, full feature dim (constant across class axis).
                pl.BlockSpec((tm_eff, D), lambda i, j: (i, 0)),
                # weight: one class tile, full feature dim (exact column norms).
                pl.BlockSpec((D, tn_eff), lambda i, j: (0, j)),
            ],
            out_specs=pl.BlockSpec((tm_eff, tn_eff), lambda i, j: (i, j)),
        ),
        compiler_params=pltpu.CompilerParams(
            # No cross-iteration scratch -> every (i, j) tile is independent;
            # lets v7x shard class tiles across its 2 TensorCores even when B
            # is a single tile. Harmless on single-TC v5e/v6e.
            dimension_semantics=("parallel", "parallel"),
            # Explicit VMEM budget: covers full-D double-buffered blocks at
            # tm=tn=256, D=2048 with headroom; fits every generation's VMEM.
            vmem_limit_bytes=32 * 1024 * 1024,
        ),
    )(x_p, w_prepared)

    return out[:B, :num_classes]


def cosine_classifier(x, weight, *, tm=256, tn=256, use_bf16_matmul=True):
    """Convenience one-shot API: x (B, D) f32, weight (D, C) f32 -> (B, C) f32."""
    w_p, tn_eff = prepare_weight(weight, tn=tn, use_bf16_matmul=use_bf16_matmul)
    return cosine_classifier_forward(
        x, w_p, weight.shape[1], tn_eff, tm=tm, use_bf16_matmul=use_bf16_matmul)


def _init_weight(key, feat_dim, num_classes):
    # Mirror the PyTorch init: uniform(-1, 1), renorm columns to max L2 norm
    # 1e-5, then multiply by 1e5  => each column has norm ~1.
    w = jax.random.uniform(key, (feat_dim, num_classes), dtype=jnp.float32,
                           minval=-1.0, maxval=1.0)
    col_norm = jnp.linalg.norm(w, axis=0, keepdims=True)
    scale = jnp.where(col_norm > 1e-5, 1e-5 / (col_norm + 1e-7), 1.0)
    return w * scale * 1e5


def _reference(x, w):
    eps = 1e-12
    xn = x / jnp.maximum(jnp.linalg.norm(x, axis=1, keepdims=True), eps)
    wn = w / jnp.maximum(jnp.linalg.norm(w, axis=0, keepdims=True), eps)
    return xn @ wn


if __name__ == "__main__":
    # Small shapes consistent with the module (real model: feat_dim=2048,
    # num_classes=1000). num_classes=1000 exercises the non-tile-aligned path.
    B, FEAT_DIM, NUM_CLASSES = 8, 256, 1000

    key = jax.random.PRNGKey(0)
    kx, kw = jax.random.split(key)
    x = jax.random.normal(kx, (B, FEAT_DIM), dtype=jnp.float32)
    weight = _init_weight(kw, FEAT_DIM, NUM_CLASSES)

    ref = _reference(x, weight)

    # Default fast path: bf16 MXU operands, f32 accumulation, cached bf16 weight.
    w_bf16, tn_eff = prepare_weight(weight, use_bf16_matmul=True)
    out_bf16 = jax.block_until_ready(
        cosine_classifier_forward(x, w_bf16, NUM_CLASSES, tn_eff,
                                  use_bf16_matmul=True))
    assert out_bf16.shape == (B, NUM_CLASSES)
    assert jnp.allclose(out_bf16, ref, atol=1e-2, rtol=1e-2), "bf16 path mismatch"

    # Exact path: f32 operands end to end (matches PyTorch fp32 semantics tightly).
    out_f32 = jax.block_until_ready(
        cosine_classifier(x, weight, use_bf16_matmul=False))
    assert out_f32.shape == (B, NUM_CLASSES)
    assert jnp.allclose(out_f32, ref, atol=1e-5, rtol=1e-5), "f32 path mismatch"

    print("KERNEL_OK")
</pallas_src>

<mosaic_0001>
module attributes {stable_mosaic.version = 11 : i64} {
  func.func @_cosine_kernel(%arg0: i32, %arg1: i32, %arg2: memref<8x256xf32, #tpu.memory_space<vmem>>, %arg3: memref<256x256xbf16, #tpu.memory_space<vmem>>, %arg4: memref<8x256xf32, #tpu.memory_space<vmem>>) attributes {dimension_semantics = [#tpu.dimension_semantics<parallel>, #tpu.dimension_semantics<parallel>], iteration_bounds = array<i64: 1, 4>, scalar_prefetch = 0 : i64, scratch_operands = 0 : i64, tpu.core_type = #tpu.core_type<tc>, window_params = [{transform_indices = @transform_0, window_bounds = array<i64: 8, 256>}, {transform_indices = @transform_1, window_bounds = array<i64: 256, 256>}, {transform_indices = @transform_2, window_bounds = array<i64: 8, 256>}]} {
    %c0 = arith.constant 0 : index
    %c0_0 = arith.constant 0 : index
    %0 = vector.load %arg2[%c0, %c0_0] : memref<8x256xf32, #tpu.memory_space<vmem>>, vector<8x256xf32>
    %c0_1 = arith.constant 0 : index
    %c0_2 = arith.constant 0 : index
    %1 = vector.load %arg3[%c0_1, %c0_2] : memref<256x256xbf16, #tpu.memory_space<vmem>>, vector<256x256xbf16>
    %2 = arith.extf %1 : vector<256x256xbf16> to vector<256x256xf32>
    %3 = arith.mulf %0, %0 : vector<8x256xf32>
    %cst = arith.constant dense<0.000000e+00> : vector<8xf32>
    %4 = vector.multi_reduction <add>, %3, %cst [1] : vector<8x256xf32> to vector<8xf32>
    %5 = vector.shape_cast %4 : vector<8xf32> to vector<8x1xf32>
    %cst_3 = arith.constant 1.000000e-24 : f32
    %6 = vector.broadcast %cst_3 : f32 to vector<8x1xf32>
    %7 = arith.maximumf %5, %6 : vector<8x1xf32>
    %8 = math.rsqrt %7 : vector<8x1xf32>
    %9 = arith.mulf %2, %2 : vector<256x256xf32>
    %cst_4 = arith.constant dense<0.000000e+00> : vector<256xf32>
    %10 = vector.multi_reduction <add>, %9, %cst_4 [0] : vector<256x256xf32> to vector<256xf32>
    %11 = vector.shape_cast %10 : vector<256xf32> to vector<1x256xf32>
    %cst_5 = arith.constant 1.000000e-24 : f32
    %12 = vector.broadcast %cst_5 : f32 to vector<1x256xf32>
    %13 = arith.maximumf %11, %12 : vector<1x256xf32>
    %14 = math.rsqrt %13 : vector<1x256xf32>
    %15 = arith.truncf %0 : vector<8x256xf32> to vector<8x256xbf16>
    %cst_6 = arith.constant dense<0.000000e+00> : vector<8x256xf32>
    %16 = tpu.matmul %15, %1, %cst_6 {dimension_numbers = #tpu.dot_dimension_numbers<[1], [0], [0], [1], [0, 0, 1, 1], [], []>} : vector<8x256xbf16>, vector<256x256xbf16>, vector<8x256xf32> -> vector<8x256xf32>
    %17 = vector.broadcast %8 : vector<8x1xf32> to vector<8x256xf32>
    %18 = arith.mulf %16, %17 : vector<8x256xf32>
    %19 = vector.broadcast %14 : vector<1x256xf32> to vector<8x256xf32>
    %20 = arith.mulf %18, %19 : vector<8x256xf32>
    %c0_7 = arith.constant 0 : index
    %c0_8 = arith.constant 0 : index
    %21 = vector.load %arg4[%c0_7, %c0_8] : memref<8x256xf32, #tpu.memory_space<vmem>>, vector<8x256xf32>
    tpu.vector_store %arg4[%c0_7, %c0_8], %20 {strides = array<i32>} : memref<8x256xf32, #tpu.memory_space<vmem>>, vector<8x256xf32>,
    return
  }
  func.func @transform_0(%arg0: i32, %arg1: i32) -> (i32, i32) {
    %c0_i32 = arith.constant 0 : i32
    %c0_i32_0 = arith.constant 0 : i32
    return %arg0, %c0_i32 : i32, i32
  }
  func.func @transform_1(%arg0: i32, %arg1: i32) -> (i32, i32) {
    %c0_i32 = arith.constant 0 : i32
    %c0_i32_0 = arith.constant 0 : i32
    return %c0_i32, %arg1 : i32, i32
  }
  func.func @transform_2(%arg0: i32, %arg1: i32) -> (i32, i32) {
    %c0_i32 = arith.constant 0 : i32
    return %arg0, %arg1 : i32, i32
  }
}

</mosaic_0001>

<llo_original>
// kernel: tpu_custom_call.1
$region0: #{tpu_custom_call.1}
  #allocation0 [shape = 'u32[]', space=smem, size = 0x4, offset = 0x4, fixed_abs, tag = 'smem constant byte address 0x4 - core index']
  #allocation1 [shape = 'u32[144,128]{1,0:T(1,128)}', space=vmem, size = 0x12000, scoped, tag = 'internal scratch']
  %s0 = inlined_call_operand.hbm [shape: f32[8,256], index: 0, kind: input, shape index: {}]
  %s1 = inlined_call_operand.hbm [shape: bf16[256,1024], index: 1, kind: input, shape index: {}]
  %s2 = inlined_call_operand.hbm [shape: f32[8,1024], index: 2, kind: output, shape index: {}]
  %s3 = sld [smem:[#allocation0]]
  $region49: #{tpu_custom_call.1} parent=0
    _
  %s5 = ssub.s32 1, %s3
  %s6 = scalar_select 0, %s5, %s3
  $region1: #{tpu_custom_call.1} parent=0
    #allocation2 [shape = 'u8[8192]{0}', space=vmem, size = 0x2000, scoped, tag = 'input window, operand 0, single buffered']
    #allocation3 [shape = 's32[2]{0}', space=sflag, size = 0x8, scoped, tag = 'scoped memory for tpu_custom_call.1']
    #allocation4 [shape = 's32[2]{0}', space=sflag, size = 0x8, scoped, tag = 'scoped memory for tpu_custom_call.1']
    #allocation5 [shape = 'u8[262144]{0}', space=vmem, size = 0x40000, scoped, tag = 'input window, operand 1']
    #allocation6 [shape = 's32[2]{0}', space=sflag, size = 0x8, scoped, tag = 'scoped memory for tpu_custom_call.1']
    #allocation7 [shape = 'u8[16384]{0}', space=vmem, size = 0x4000, scoped, tag = 'output window, operand 0']
    %7 = vsyncpa [#allocation3], 0
    %8 = vsyncpa [#allocation6], 0
    %s9 = scalar_lea.sflag [#allocation6], 1
    %10 = vsyncpa %s9, 0
    %11 = vsyncpa [#allocation4], 0
    %s12 = scalar_lea.sflag [#allocation4], 1
    %13 = vsyncpa %s12, 0
    loop: start=0, step=1, limit=6
    $region2: #{tpu_custom_call.1} parent=1 // loop_pre_header
      _
    $region3: #{tpu_custom_call.1} parent=1 // loop_header
      %s15 = sphi 0, %s19
      %p16 = scmp.ge.s32.totalorder %s15, 6
      %s22 = sphi 0, %s34
      %s23 = sphi 0, %s30
      %s24 = sphi 0, %s22
      %s25 = sphi 0, %s23
      %s26 = sphi 0, %s24
      %s27 = sphi 0, %s25
      %s37 = sphi 0, %s39
      %s40 = sphi 0, %s37
      %s41 = sphi 0, %s40
      %s57 = sphi 0, %s41
      %s63 = sphi 0, %s65
      %s66 = sphi 0, %s63
      %s67 = sphi 0, %s66
      %s83 = sphi 0, %s67
      %s91 = sphi 0, %s93
      %s94 = sphi 0, %s91
      %s95 = sphi 0, %s94
      %s111 = sphi 0, %s95
    $region4: #{tpu_custom_call.1} parent=1 // loop_header_branch
      %18 = sbr.rel (%p16) target = $region8
    $region5: #{tpu_custom_call.1} parent=1 // loop_body
      %s20 = ssub.s32 %s15, 1
      %s21 = ssub.s32 %s15, 2
      %s28 = sadd.s32 1, %s23
      %p29 = scmp.ge.s32.totalorder %s28, 4
      %s30 = scalar_select %p29, 0, %s28
      %s31 = sadd.s32 1, %s22
      %s32 = scalar_select %p29, %s31, %s22
      %p33 = scmp.ge.s32.totalorder %s32, 1
      %s34 = scalar_select %p33, 0, %s32
      %s35 = ssub.s32 %s22, %s34
      %p36 = scmp.eq.s32.totalorder %s35, 0
      %s38 = sadd.s32 %s37, 1
      %s39 = scalar_select %p36, %s37, %s38
      %p42 = pneg %p36
      %p43 = scmp.eq.s32.totalorder %s15, 3
      %p44 = por %p42, %p43
      %p45 = scmp.ne.s32.totalorder %s37, %s40
      %p46 = scmp.eq.s32.totalorder %s15, 0
      %p47 = por %p45, %p46
      %p48 = scmp.ne.s32.totalorder %s37, %s40
      %p49 = scmp.eq.s32.totalorder %s20, 3
      %p50 = por %p48, %p49
      %p51 = scmp.ne.s32.totalorder %s40, %s41
      %p52 = scmp.eq.s32.totalorder %s20, 0
      %p53 = por %p51, %p52
      %p54 = scmp.ne.s32.totalorder %s40, %s41
      %p55 = scmp.eq.s32.totalorder %s21, 3
      %p56 = por %p54, %p55
      %p58 = scmp.ne.s32.totalorder %s41, %s57
      %p59 = scmp.eq.s32.totalorder %s21, 0
      %p60 = por %p58, %p59
      %s61 = ssub.s32 %s23, %s30
      %p62 = scmp.eq.s32.totalorder %s61, 0
      %s64 = sadd.s32 %s63, 1
      %s65 = scalar_select %p62, %s63, %s64
      %p68 = pneg %p62
      %p69 = scmp.eq.s32.totalorder %s15, 3
      %p70 = por %p68, %p69
      %p71 = scmp.ne.s32.totalorder %s63, %s66
      %p72 = scmp.eq.s32.totalorder %s15, 0
      %p73 = por %p71, %p72
      %p74 = scmp.ne.s32.totalorder %s63, %s66
      %p75 = scmp.eq.s32.totalorder %s20, 3
      %p76 = por %p74, %p75
      %p77 = scmp.ne.s32.totalorder %s66, %s67
      %p78 = scmp.eq.s32.totalorder %s20, 0
      %p79 = por %p77, %p78
      %p80 = scmp.ne.s32.totalorder %s66, %s67
      %p81 = scmp.eq.s32.totalorder %s21, 3
      %p82 = por %p80, %p81
      %p84 = scmp.ne.s32.totalorder %s67, %s83
      %p85 = scmp.eq.s32.totalorder %s21, 0
      %p86 = por %p84, %p85
      %s87 = ssub.s32 %s22, %s34
      %s88 = ssub.s32 %s23, %s30
      %s89 = sor.u32 %s87, %s88
      %p90 = scmp.eq.s32.totalorder %s89, 0
      %s92 = sadd.s32 %s91, 1
      %s93 = scalar_select %p90, %s91, %s92
      %p96 = pneg %p90
      %p97 = scmp.eq.s32.totalorder %s15, 3
      %p98 = por %p96, %p97
      %p99 = scmp.ne.s32.totalorder %s91, %s94
      %p100 = scmp.eq.s32.totalorder %s15, 0
      %p101 = por %p99, %p100
      %p102 = scmp.ne.s32.totalorder %s91, %s94
      %p103 = scmp.eq.s32.totalorder %s20, 3
      %p104 = por %p102, %p103
      %p105 = scmp.ne.s32.totalorder %s94, %s95
      %p106 = scmp.eq.s32.totalorder %s20, 0
      %p107 = por %p105, %p106
      %p108 = scmp.ne.s32.totalorder %s94, %s95
      %p109 = scmp.eq.s32.totalorder %s21, 3
      %p110 = por %p108, %p109
      %p112 = scmp.ne.s32.totalorder %s95, %s111
      %p113 = scmp.eq.s32.totalorder %s21, 0
      %p114 = por %p112, %p113
      %p115 = scmp.le.s32.totalorder 1, %s15
      %p116 = scmp.lt.s32.totalorder %s15, 5
      %p117 = pnand %p115, %p116
      %p118 = pneg %p117
      // Predicated region
      $region9: #{tpu_custom_call.1} parent=5 // pred_check
        _
      $region10: #{tpu_custom_call.1} parent=5 // pred_check_branch
        %120 = sbr.rel (%p117) target = $region12
      $region11: #{tpu_custom_call.1} parent=5 // pred_region
        %s121 = ssub.s32 %s15, 1
        // Predicated region
        $region13: #{tpu_custom_call.1} parent=11 // pred_check
          %p122 = pneg %p53
        $region14: #{tpu_custom_call.1} parent=11 // pred_check_branch
          %124 = sbr.rel (%p122) target = $region16
        $region15: #{tpu_custom_call.1} parent=11 // pred_region
          %s126 = ssub.s32 256, 256
          %127 = vsyncadd [#allocation3], %s126
          %s128 = smul.addr %s24, 2
          %s129 = smul.addr %s128, 128
          %s130 = scalar_lea.hbm %s0, %s129
          %s132 = sshll.u32 [#allocation2], 4
          %s133 = int_to_ptr.vmem [resolvable:$true] %s132
          %135 = dma.hbm_to_vmem [thread:$0]  %s130, 256, %s133, [#allocation3]
        $region16: #{tpu_custom_call.1} parent=11 // pred_fallthru
          _
      $region12: #{tpu_custom_call.1} parent=5 // pred_fallthru
        _
      %p136 = scmp.lt.s32.totalorder %s15, 4
      // Predicated region
      $region17: #{tpu_custom_call.1} parent=5 // pred_check
        %p137 = pneg %p136
      $region18: #{tpu_custom_call.1} parent=5 // pred_check_branch
        %139 = sbr.rel (%p137) target = $region20
      $region19: #{tpu_custom_call.1} parent=5 // pred_region
        // Predicated region
        $region21: #{tpu_custom_call.1} parent=19 // pred_check
          %p140 = pneg %p73
        $region22: #{tpu_custom_call.1} parent=19 // pred_check_branch
          %142 = sbr.rel (%p140) target = $region24
        $region23: #{tpu_custom_call.1} parent=19 // pred_region
          %s143 = sand.u32 %s63, 1
          %s144 = scalar_lea.sflag [#allocation6], %s143
          %s145 = sand.u32 %s63, 1
          %s146 = smul.addr %s145, 256
          %s147 = scalar_lea.vmem [#allocation5], %s146
          %s148 = smul.u32 2, %s23
          %s150 = ssub.s32 4096, 4096
          %151 = vsyncadd %s144, %s150
          %s152 = smul.addr %s148, 64
          %s153 = scalar_lea.hbm %s1, %s152
          %s154 = sshll.u32 %s147, 4
          %s155 = int_to_ptr.vmem [resolvable:$true] %s154
          %160 = dma.hbm_to_vmem [thread:$0]  %s153, 4096, %s155, %s144, 512, 128, 8
        $region24: #{tpu_custom_call.1} parent=19 // pred_fallthru
          _
      $region20: #{tpu_custom_call.1} parent=5 // pred_fallthru
        _
      %p161 = scmp.le.s32.totalorder 1, %s15
      %p162 = scmp.lt.s32.totalorder %s15, 5
      %p163 = pnand %p161, %p162
      %p164 = pneg %p163
      // Predicated region
      $region25: #{tpu_custom_call.1} parent=5 // pred_check
        _
      $region26: #{tpu_custom_call.1} parent=5 // pred_check_branch
        %166 = sbr.rel (%p163) target = $region28
      $region27: #{tpu_custom_call.1} parent=5 // pred_region
        %s167 = ssub.s32 %s15, 1
        // Predicated region
        $region29: #{tpu_custom_call.1} parent=27 // pred_check
          %p168 = pneg %p53
        $region30: #{tpu_custom_call.1} parent=27 // pred_check_branch
          %170 = sbr.rel (%p168) target = $region32
        $region31: #{tpu_custom_call.1} parent=27 // pred_region
          %171 = dma.done [#allocation3], 256
        $region32: #{tpu_custom_call.1} parent=27 // pred_fallthru
          _
        %s172 = sand.u32 %s66, 1
        %s173 = scalar_lea.sflag [#allocation6], %s172
        %s174 = sand.u32 %s66, 1
        %s175 = smul.addr %s174, 256
        %s176 = scalar_lea.vmem [#allocation5], %s175
        // Predicated region
        $region33: #{tpu_custom_call.1} parent=27 // pred_check
          %p177 = pneg %p79
        $region34: #{tpu_custom_call.1} parent=27 // pred_check_branch
          %179 = sbr.rel (%p177) target = $region36
        $region35: #{tpu_custom_call.1} parent=27 // pred_region
          %180 = dma.done %s173, 4096
        $region36: #{tpu_custom_call.1} parent=27 // pred_fallthru
          _
        %p181 = pneg %p53
        %p182 = pneg %p50
        %s183 = sand.u32 %s66, 1
        %s184 = scalar_lea.sflag [#allocation6], %s183
        %s185 = sand.u32 %s66, 1
        %s186 = smul.addr %s185, 256
        %s187 = scalar_lea.vmem [#allocation5], %s186
        %p188 = pneg %p79
        %p189 = pneg %p76
        %p190 = pneg %p107
        %p191 = pneg %p104
        %s192 = sand.u32 %s94, 1
        %s193 = scalar_lea.sflag [#allocation4], %s192
        %s194 = sand.u32 %s94, 1
        %s195 = smul.addr %s194, 16
        %s196 = scalar_lea.vmem [#allocation7], %s195
        %s197 = smul.u32 2, %s25
        %s198 = smul.u32 2, %s25
        %v199 = vld [vmem:[#allocation2] sm:$0xff]
        %v200 = vld [vmem:[#allocation2 + $0x8] sm:$0xff]
        %v201 = vld [vmem:[%s176] sm:$0xff]
        %v202 = vld [vmem:[%s176 + $0x8] sm:$0xff]
        %v203 = vld [vmem:[%s176 + $0x10] sm:$0xff]
        %v204 = vld [vmem:[%s176 + $0x18] sm:$0xff]
        %v205 = vld [vmem:[%s176 + $0x20] sm:$0xff]
        %v206 = vld [vmem:[%s176 + $0x28] sm:$0xff]
        %v207 = vld [vmem:[%s176 + $0x30] sm:$0xff]
        %v208 = vld [vmem:[%s176 + $0x38] sm:$0xff]
        %v209 = vld [vmem:[%s176 + $0x40] sm:$0xff]
        %v210 = vld [vmem:[%s176 + $0x48] sm:$0xff]
        %v211 = vld [vmem:[%s176 + $0x50] sm:$0xff]
        %v212 = vld [vmem:[%s176 + $0x58] sm:$0xff]
        %v213 = vld [vmem:[%s176 + $0x60] sm:$0xff]
        %v214 = vld [vmem:[%s176 + $0x68] sm:$0xff]
        %v215 = vld [vmem:[%s176 + $0x70] sm:$0xff]
        %v216 = vld [vmem:[%s176 + $0x78] sm:$0xff]
        %v217 = vld [vmem:[%s176 + $0x80] sm:$0xff]
        %v218 = vld [vmem:[%s176 + $0x88] sm:$0xff]
        %v219 = vld [vmem:[%s176 + $0x90] sm:$0xff]
        %v220 = vld [vmem:[%s176 + $0x98] sm:$0xff]
        %v221 = vld [vmem:[%s176 + $0xa0] sm:$0xff]
        %v222 = vld [vmem:[%s176 + $0xa8] sm:$0xff]
        %v223 = vld [vmem:[%s176 + $0xb0] sm:$0xff]
        %v224 = vld [vmem:[%s176 + $0xb8] sm:$0xff]
        %v225 = vld [vmem:[%s176 + $0xc0] sm:$0xff]
        %v226 = vld [vmem:[%s176 + $0xc8] sm:$0xff]
        %v227 = vld [vmem:[%s176 + $0xd0] sm:$0xff]
        %v228 = vld [vmem:[%s176 + $0xd8] sm:$0xff]
        %v229 = vld [vmem:[%s176 + $0xe0] sm:$0xff]
        %v230 = vld [vmem:[%s176 + $0xe8] sm:$0xff]
        %v231 = vld [vmem:[%s176 + $0xf0] sm:$0xff]
        %v232 = vld [vmem:[%s176 + $0xf8] sm:$0xff]
        %v233 = vunpack.c.l.bf16 %v201
        %v234 = vunpack.c.h.bf16 %v201
        %v235 = vunpack.c.l.bf16 %v202
        %v236 = vunpack.c.h.bf16 %v202
        %v237 = vunpack.c.l.bf16 %v203
        %v238 = vunpack.c.h.bf16 %v203
        %v239 = vunpack.c.l.bf16 %v204
        %v240 = vunpack.c.h.bf16 %v204
        %v241 = vunpack.c.l.bf16 %v205
        %v242 = vunpack.c.h.bf16 %v205
        %v243 = vunpack.c.l.bf16 %v206
        %v244 = vunpack.c.h.bf16 %v206
        %v245 = vunpack.c.l.bf16 %v207
        %v246 = vunpack.c.h.bf16 %v207
        %v247 = vunpack.c.l.bf16 %v208
        %v248 = vunpack.c.h.bf16 %v208
        %v249 = vunpack.c.l.bf16 %v209
        %v250 = vunpack.c.h.bf16 %v209
        %v251 = vunpack.c.l.bf16 %v210
        %v252 = vunpack.c.h.bf16 %v210
        %v253 = vunpack.c.l.bf16 %v211
        %v254 = vunpack.c.h.bf16 %v211
        %v255 = vunpack.c.l.bf16 %v212
        %v256 = vunpack.c.h.bf16 %v212
        %v257 = vunpack.c.l.bf16 %v213
        %v258 = vunpack.c.h.bf16 %v213
        %v259 = vunpack.c.l.bf16 %v214
        %v260 = vunpack.c.h.bf16 %v214
        %v261 = vunpack.c.l.bf16 %v215
        %v262 = vunpack.c.h.bf16 %v215
        %v263 = vunpack.c.l.bf16 %v216
        %v264 = vunpack.c.h.bf16 %v216
        %v265 = vunpack.c.l.bf16 %v217
        %v266 = vunpack.c.h.bf16 %v217
        %v267 = vunpack.c.l.bf16 %v218
        %v268 = vunpack.c.h.bf16 %v218
        %v269 = vunpack.c.l.bf16 %v219
        %v270 = vunpack.c.h.bf16 %v219
        %v271 = vunpack.c.l.bf16 %v220
        %v272 = vunpack.c.h.bf16 %v220
        %v273 = vunpack.c.l.bf16 %v221
        %v274 = vunpack.c.h.bf16 %v221
        %v275 = vunpack.c.l.bf16 %v222
        %v276 = vunpack.c.h.bf16 %v222
        %v277 = vunpack.c.l.bf16 %v223
        %v278 = vunpack.c.h.bf16 %v223
        %v279 = vunpack.c.l.bf16 %v224
        %v280 = vunpack.c.h.bf16 %v224
        %v281 = vunpack.c.l.bf16 %v225
        %v282 = vunpack.c.h.bf16 %v225
        %v283 = vunpack.c.l.bf16 %v226
        %v284 = vunpack.c.h.bf16 %v226
        %v285 = vunpack.c.l.bf16 %v227
        %v286 = vunpack.c.h.bf16 %v227
        %v287 = vunpack.c.l.bf16 %v228
        %v288 = vunpack.c.h.bf16 %v228
        %v289 = vunpack.c.l.bf16 %v229
        %v290 = vunpack.c.h.bf16 %v229
        %v291 = vunpack.c.l.bf16 %v230
        %v292 = vunpack.c.h.bf16 %v230
        %v293 = vunpack.c.l.bf16 %v231
        %v294 = vunpack.c.h.bf16 %v231
        %v295 = vunpack.c.l.bf16 %v232
        %v296 = vunpack.c.h.bf16 %v232
        %v297 = vmul.f32 %v199, %v199
        %v298 = vmul.f32 %v200, %v200
        %v299 = vadd.f32 %v297, %v298
        %300 = vadd.xlane.f32.xlu0 %v299
        %v301 = vpop.xlane.xlu0 %300
        %v302 = vmax.f32 %v301, 1e-24
        %v303 = vrsqrt.pop %v302
        %v304 = vmul.f32 %v233, %v233
        %v305 = vmul.f32 %v234, %v234
        %v306 = vmul.f32 %v235, %v235
        %v307 = vmul.f32 %v236, %v236
        %v308 = vmul.f32 %v237, %v237
        %v309 = vmul.f32 %v238, %v238
        %v310 = vmul.f32 %v239, %v239
        %v311 = vmul.f32 %v240, %v240
        %v312 = vmul.f32 %v241, %v241
        %v313 = vmul.f32 %v242, %v242
        %v314 = vmul.f32 %v243, %v243
        %v315 = vmul.f32 %v244, %v244
        %v316 = vmul.f32 %v245, %v245
        %v317 = vmul.f32 %v246, %v246
        %v318 = vmul.f32 %v247, %v247
        %v319 = vmul.f32 %v248, %v248
        %v320 = vmul.f32 %v249, %v249
        %v321 = vmul.f32 %v250, %v250
        %v322 = vmul.f32 %v251, %v251
        %v323 = vmul.f32 %v252, %v252
        %v324 = vmul.f32 %v253, %v253
        %v325 = vmul.f32 %v254, %v254
        %v326 = vmul.f32 %v255, %v255
        %v327 = vmul.f32 %v256, %v256
        %v328 = vmul.f32 %v257, %v257
        %v329 = vmul.f32 %v258, %v258
        %v330 = vmul.f32 %v259, %v259
        %v331 = vmul.f32 %v260, %v260
        %v332 = vmul.f32 %v261, %v261
        %v333 = vmul.f32 %v262, %v262
        %v334 = vmul.f32 %v263, %v263
        %v335 = vmul.f32 %v264, %v264
        %v336 = vmul.f32 %v265, %v265
        %v337 = vmul.f32 %v266, %v266
        %v338 = vmul.f32 %v267, %v267
        %v339 = vmul.f32 %v268, %v268
        %v340 = vmul.f32 %v269, %v269
        %v341 = vmul.f32 %v270, %v270
        %v342 = vmul.f32 %v271, %v271
        %v343 = vmul.f32 %v272, %v272
        %v344 = vmul.f32 %v273, %v273
        %v345 = vmul.f32 %v274, %v274
        %v346 = vmul.f32 %v275, %v275
        %v347 = vmul.f32 %v276, %v276
        %v348 = vmul.f32 %v277, %v277
        %v349 = vmul.f32 %v278, %v278
        %v350 = vmul.f32 %v279, %v279
        %v351 = vmul.f32 %v280, %v280
        %v352 = vmul.f32 %v281, %v281
        %v353 = vmul.f32 %v282, %v282
        %v354 = vmul.f32 %v283, %v283
        %v355 = vmul.f32 %v284, %v284
        %v356 = vmul.f32 %v285, %v285
        %v357 = vmul.f32 %v286, %v286
        %v358 = vmul.f32 %v287, %v287
        %v359 = vmul.f32 %v288, %v288
        %v360 = vmul.f32 %v289, %v289
        %v361 = vmul.f32 %v290, %v290
        %v362 = vmul.f32 %v291, %v291
        %v363 = vmul.f32 %v292, %v292
        %v364 = vmul.f32 %v293, %v293
        %v365 = vmul.f32 %v294, %v294
        %v366 = vmul.f32 %v295, %v295
        %v367 = vmul.f32 %v296, %v296
        %v368 = vadd.f32 %v304, %v306
        %v369 = vadd.f32 %v368, %v308
        %v370 = vadd.f32 %v369, %v310
        %v371 = vadd.f32 %v370, %v312
        %v372 = vadd.f32 %v371, %v314
        %v373 = vadd.f32 %v372, %v316
        %v374 = vadd.f32 %v373, %v318
        %v375 = vadd.f32 %v374, %v320
        %v376 = vadd.f32 %v375, %v322
        %v377 = vadd.f32 %v376, %v324
        %v378 = vadd.f32 %v377, %v326
        %v379 = vadd.f32 %v378, %v328
        %v380 = vadd.f32 %v379, %v330
        %v381 = vadd.f32 %v380, %v332
        %v382 = vadd.f32 %v381, %v334
        %v383 = vadd.f32 %v382, %v336
        %v384 = vadd.f32 %v383, %v338
        %v385 = vadd.f32 %v384, %v340
        %v386 = vadd.f32 %v385, %v342
        %v387 = vadd.f32 %v386, %v344
        %v388 = vadd.f32 %v387, %v346
        %v389 = vadd.f32 %v388, %v348
        %v390 = vadd.f32 %v389, %v350
        %v391 = vadd.f32 %v390, %v352
        %v392 = vadd.f32 %v391, %v354
        %v393 = vadd.f32 %v392, %v356
        %v394 = vadd.f32 %v393, %v358
        %v395 = vadd.f32 %v394, %v360
        %v396 = vadd.f32 %v395, %v362
        %v397 = vadd.f32 %v396, %v364
        %v398 = vadd.f32 %v397, %v366
        %v399 = vrot.slane %v398, 4
        %v400 = vadd.f32 %v398, %v399
        %v401 = vrot.slane %v400, 2
        %v402 = vadd.f32 %v400, %v401
        %v403 = vrot.slane %v402, 1
        %v404 = vadd.f32 %v402, %v403
        %v405 = vadd.f32 %v305, %v307
        %v406 = vadd.f32 %v405, %v309
        %v407 = vadd.f32 %v406, %v311
        %v408 = vadd.f32 %v407, %v313
        %v409 = vadd.f32 %v408, %v315
        %v410 = vadd.f32 %v409, %v317
        %v411 = vadd.f32 %v410, %v319
        %v412 = vadd.f32 %v411, %v321
        %v413 = vadd.f32 %v412, %v323
        %v414 = vadd.f32 %v413, %v325
        %v415 = vadd.f32 %v414, %v327
        %v416 = vadd.f32 %v415, %v329
        %v417 = vadd.f32 %v416, %v331
        %v418 = vadd.f32 %v417, %v333
        %v419 = vadd.f32 %v418, %v335
        %v420 = vadd.f32 %v419, %v337
        %v421 = vadd.f32 %v420, %v339
        %v422 = vadd.f32 %v421, %v341
        %v423 = vadd.f32 %v422, %v343
        %v424 = vadd.f32 %v423, %v345
        %v425 = vadd.f32 %v424, %v347
        %v426 = vadd.f32 %v425, %v349
        %v427 = vadd.f32 %v426, %v351
        %v428 = vadd.f32 %v427, %v353
        %v429 = vadd.f32 %v428, %v355
        %v430 = vadd.f32 %v429, %v357
        %v431 = vadd.f32 %v430, %v359
        %v432 = vadd.f32 %v431, %v361
        %v433 = vadd.f32 %v432, %v363
        %v434 = vadd.f32 %v433, %v365
        %v435 = vadd.f32 %v434, %v367
        %v436 = vrot.slane %v435, 4
        %v437 = vadd.f32 %v435, %v436
        %v438 = vrot.slane %v437, 2
        %v439 = vadd.f32 %v437, %v438
        %v440 = vrot.slane %v439, 1
        %v441 = vadd.f32 %v439, %v440
        %v442 = vmax.f32 %v404, 1e-24
        %v443 = vmax.f32 %v441, 1e-24
        %v444 = vrsqrt.pop %v442
        %v445 = vrsqrt.pop %v443
        %v446 = vpack.c.bf16 %v199, %v199
        %v447 = vpack.c.bf16 %v200, %v200
        %v480 = vunpack.c.l.b16 %v201
        %v481 = vunpack.c.h.b16 %v201
        %v482 = vunpack.c.l.b16 %v202
        %v483 = vunpack.c.h.b16 %v202
        %v484 = vunpack.c.l.b16 %v203
        %v485 = vunpack.c.h.b16 %v203
        %v486 = vunpack.c.l.b16 %v204
        %v487 = vunpack.c.h.b16 %v204
        %v488 = vunpack.c.l.b16 %v205
        %v489 = vunpack.c.h.b16 %v205
        %v490 = vunpack.c.l.b16 %v206
        %v491 = vunpack.c.h.b16 %v206
        %v492 = vunpack.c.l.b16 %v207
        %v493 = vunpack.c.h.b16 %v207
        %v494 = vunpack.c.l.b16 %v208
        %v495 = vunpack.c.h.b16 %v208
        %v496 = vunpack.c.l.b16 %v209
        %v497 = vunpack.c.h.b16 %v209
        %v498 = vunpack.c.l.b16 %v210
        %v499 = vunpack.c.h.b16 %v210
        %v500 = vunpack.c.l.b16 %v211
        %v501 = vunpack.c.h.b16 %v211
        %v502 = vunpack.c.l.b16 %v212
        %v503 = vunpack.c.h.b16 %v212
        %v504 = vunpack.c.l.b16 %v213
        %v505 = vunpack.c.h.b16 %v213
        %v506 = vunpack.c.l.b16 %v214
        %v507 = vunpack.c.h.b16 %v214
        %v508 = vunpack.c.l.b16 %v215
        %v509 = vunpack.c.h.b16 %v215
        %v510 = vunpack.c.l.b16 %v216
        %v511 = vunpack.c.h.b16 %v216
        %v512 = vunpack.c.l.b16 %v217
        %v513 = vunpack.c.h.b16 %v217
        %v514 = vunpack.c.l.b16 %v218
        %v515 = vunpack.c.h.b16 %v218
        %v516 = vunpack.c.l.b16 %v219
        %v517 = vunpack.c.h.b16 %v219
        %v518 = vunpack.c.l.b16 %v220
        %v519 = vunpack.c.h.b16 %v220
        %v520 = vunpack.c.l.b16 %v221
        %v521 = vunpack.c.h.b16 %v221
        %v522 = vunpack.c.l.b16 %v222
        %v523 = vunpack.c.h.b16 %v222
        %v524 = vunpack.c.l.b16 %v223
        %v525 = vunpack.c.h.b16 %v223
        %v526 = vunpack.c.l.b16 %v224
        %v527 = vunpack.c.h.b16 %v224
        %v528 = vunpack.c.l.b16 %v225
        %v529 = vunpack.c.h.b16 %v225
        %v530 = vunpack.c.l.b16 %v226
        %v531 = vunpack.c.h.b16 %v226
        %v532 = vunpack.c.l.b16 %v227
        %v533 = vunpack.c.h.b16 %v227
        %v534 = vunpack.c.l.b16 %v228
        %v535 = vunpack.c.h.b16 %v228
        %v536 = vunpack.c.l.b16 %v229
        %v537 = vunpack.c.h.b16 %v229
        %v538 = vunpack.c.l.b16 %v230
        %v539 = vunpack.c.h.b16 %v230
        %v540 = vunpack.c.l.b16 %v231
        %v541 = vunpack.c.h.b16 %v231
        %v542 = vunpack.c.l.b16 %v232
        %v543 = vunpack.c.h.b16 %v232
        %v544 = vpack.c.b16 %v482, %v480
        %v545 = vpack.c.b16 %v483, %v481
        %v546 = vpack.c.b16 %v486, %v484
        %v547 = vpack.c.b16 %v487, %v485
        %v548 = vpack.c.b16 %v490, %v488
        %v549 = vpack.c.b16 %v491, %v489
        %v550 = vpack.c.b16 %v494, %v492
        %v551 = vpack.c.b16 %v495, %v493
        %v552 = vpack.c.b16 %v498, %v496
        %v553 = vpack.c.b16 %v499, %v497
        %v554 = vpack.c.b16 %v502, %v500
        %v555 = vpack.c.b16 %v503, %v501
        %v556 = vpack.c.b16 %v506, %v504
        %v557 = vpack.c.b16 %v507, %v505
        %v558 = vpack.c.b16 %v510, %v508
        %v559 = vpack.c.b16 %v511, %v509
        %v560 = vpack.c.b16 %v514, %v512
        %v561 = vpack.c.b16 %v515, %v513
        %v562 = vpack.c.b16 %v518, %v516
        %v563 = vpack.c.b16 %v519, %v517
        %v564 = vpack.c.b16 %v522, %v520
        %v565 = vpack.c.b16 %v523, %v521
        %v566 = vpack.c.b16 %v526, %v524
        %v567 = vpack.c.b16 %v527, %v525
        %v568 = vpack.c.b16 %v530, %v528
        %v569 = vpack.c.b16 %v531, %v529
        %v570 = vpack.c.b16 %v534, %v532
        %v571 = vpack.c.b16 %v535, %v533
        %v572 = vpack.c.b16 %v538, %v536
        %v573 = vpack.c.b16 %v539, %v537
        %v574 = vpack.c.b16 %v542, %v540
        %v575 = vpack.c.b16 %v543, %v541
        %608 = vmatprep.subr.bf16.mxu0 %v545
        %609 = vmatpush1.bf16.msra.mxu0 %v544
        %610 = vmatprep.subr.bf16.mxu0 %v547
        %611 = vmatpush1.bf16.msra.mxu0 %v546
        %612 = vmatprep.subr.bf16.mxu0 %v549
        %613 = vmatpush1.bf16.msra.mxu0 %v548
        %614 = vmatprep.subr.bf16.mxu0 %v551
        %615 = vmatpush1.bf16.msra.mxu0 %v550
        %616 = vmatprep.subr.bf16.mxu0 %v553
        %617 = vmatpush1.bf16.msra.mxu0 %v552
        %618 = vmatprep.subr.bf16.mxu0 %v555
        %619 = vmatpush1.bf16.msra.mxu0 %v554
        %620 = vmatprep.subr.bf16.mxu0 %v557
        %621 = vmatpush1.bf16.msra.mxu0 %v556
        %622 = vmatprep.subr.bf16.mxu0 %v559
        %623 = vmatpush1.bf16.msra.mxu0 %v558
        %624 = vmatprep.subr.bf16.mxu0 %v561
        %625 = vmatpush1.bf16.msra.mxu0 %v560
        %626 = vmatprep.subr.bf16.mxu0 %v563
        %627 = vmatpush1.bf16.msra.mxu0 %v562
        %628 = vmatprep.subr.bf16.mxu0 %v565
        %629 = vmatpush1.bf16.msra.mxu0 %v564
        %630 = vmatprep.subr.bf16.mxu0 %v567
        %631 = vmatpush1.bf16.msra.mxu0 %v566
        %632 = vmatprep.subr.bf16.mxu0 %v569
        %633 = vmatpush1.bf16.msra.mxu0 %v568
        %634 = vmatprep.subr.bf16.mxu0 %v571
        %635 = vmatpush1.bf16.msra.mxu0 %v570
        %636 = vmatprep.subr.bf16.mxu0 %v573
        %637 = vmatpush1.bf16.msra.mxu0 %v572
        %638 = vmatprep.subr.bf16.mxu0 %v575
        %639 = vmatpush1.bf16.msra.mxu0 %v574
        %640 = vmatprep.mubr.bf16.mxu0 %v447
        %641 = vmatmul.mubr.bf16.gmra.mrb[0].mxu0 %v446
        %v642 = vpop.f32.mrb[0].mxu0
        %v643 = vadd.f32 0.0, %v642
        %v644 = vpop.f32.mrb[0].mxu0
        %v645 = vadd.f32 0.0, %v644
        %v646 = vpop.f32.mrb[0].mxu0
        %v647 = vpop.f32.mrb[0].mxu0
        %648 = vdwg.mxu0
        %v649 = vmul.f32 %v643, %v303
        %v650 = vmul.f32 %v645, %v303
        %v651 = vmul.f32 %v649, %v444
        %v652 = vmul.f32 %v650, %v445
        %653 = vst [vmem:[%s196] sm:$0xff] %v651
        %654 = vst [vmem:[%s196 + $0x8] sm:$0xff] %v652
        %s655 = sand.u32 %s94, 1
        %s656 = scalar_lea.sflag [#allocation4], %s655
        %s657 = sand.u32 %s94, 1
        %s658 = smul.addr %s657, 16
        %s659 = scalar_lea.vmem [#allocation7], %s658
        // Predicated region
        $region37: #{tpu_custom_call.1} parent=27 // pred_check
          %p660 = pneg %p104
        $region38: #{tpu_custom_call.1} parent=27 // pred_check_branch
          %662 = sbr.rel (%p660) target = $region40
        $region39: #{tpu_custom_call.1} parent=27 // pred_region
          %s663 = smul.u32 2, %s25
          %s665 = ssub.s32 256, 256
          %666 = vsyncadd %s656, %s665
          %s667 = smul.addr %s24, 8
          %s668 = sadd.s32 %s663, %s667
          %s669 = smul.addr %s668, 128
          %s670 = scalar_lea.hbm %s2, %s669
          %s672 = sshll.u32 %s659, 4
          %s673 = int_to_ptr.vmem [resolvable:$true] %s672
          %675 = dma.vmem_to_hbm [thread:$0]  %s673, 256, %s670, %s656
        $region40: #{tpu_custom_call.1} parent=27 // pred_fallthru
          _
      $region28: #{tpu_custom_call.1} parent=5 // pred_fallthru
        _
      %p676 = scmp.le.s32.totalorder 2, %s15
      // Predicated region
      $region41: #{tpu_custom_call.1} parent=5 // pred_check
        %p677 = pneg %p676
      $region42: #{tpu_custom_call.1} parent=5 // pred_check_branch
        %679 = sbr.rel (%p677) target = $region44
      $region43: #{tpu_custom_call.1} parent=5 // pred_region
        %s680 = ssub.s32 %s15, 2
        // Predicated region
        $region45: #{tpu_custom_call.1} parent=43 // pred_check
          %p681 = pneg %p110
        $region46: #{tpu_custom_call.1} parent=43 // pred_check_branch
          %683 = sbr.rel (%p681) target = $region48
        $region47: #{tpu_custom_call.1} parent=43 // pred_region
          %s684 = sand.u32 %s95, 1
          %s685 = scalar_lea.sflag [#allocation4], %s684
          %s686 = sand.u32 %s95, 1
          %s687 = smul.addr %s686, 16
          %s688 = scalar_lea.vmem [#allocation7], %s687
          %689 = dma.done %s685, 256
        $region48: #{tpu_custom_call.1} parent=43 // pred_fallthru
          _
      $region44: #{tpu_custom_call.1} parent=5 // pred_fallthru
        _
    $region6: #{tpu_custom_call.1} parent=1 // loop_footer
      %s19 = sadd.s32 1, %s15
    $region7: #{tpu_custom_call.1} parent=1 // loop_footer_branch
      %14 = sbr.rel target = $region3
    $region8: #{tpu_custom_call.1} parent=1 // loop_exit
      _
    %690 = vsyncpa [#allocation3], 1
    %s691 = scalar_lea.sflag [#allocation3], 1
    %692 = vsyncpa %s691, 1
    %693 = vsyncpa [#allocation6], 1
    %s694 = scalar_lea.sflag [#allocation6], 1
    %695 = vsyncpa %s694, 1
    %696 = vsyncpa [#allocation4], 1
    %s697 = scalar_lea.sflag [#allocation4], 1
    %698 = vsyncpa %s697, 1

</llo_original>
